<compile_context>
chip_gen: v6e
topology: v6e:2x2x1
jax: 0.10.0
libtpu: 0.0.40
codegen_flags: <defaults>
</compile_context>

<pallas_src>
import functools

import jax
import jax.numpy as jnp
from jax.experimental import pallas as pl
from jax.experimental.pallas import tpu as pltpu


SUBLANE = 8      # f32 sublane granule (second-to-last dim)
MAX_TM = 128     # cap on the batch tile


def _round_up(n, m):
    return ((n + m - 1) // m) * m


def _cdiv(a, b):
    return -(-a // b)


def _num_tensorcores():
    """Best-effort TensorCore count per chip (2 on v7x, 1 on v5e/v6e)."""
    try:
        info = pltpu.get_tpu_info()
    except Exception:
        return 1
    for attr in ("num_cores", "core_count", "num_tensorcores",
                 "num_cores_per_chip", "tensorcore_count"):
        n = getattr(info, attr, None)
        if isinstance(n, int) and n > 0:
            return n
    return 1


def _vmem_capacity_bytes():
    try:
        return int(pltpu.get_tpu_info().vmem_capacity_bytes)
    except Exception:
        return 64 << 20   # v7x (smallest generation) as the conservative default


def _choose_batch_tile(B, num_cores):
    """Pick (tm, B_pad): aim for >= num_cores grid steps, tm <= MAX_TM.

    When a single tile covers the whole batch, pass the full array unpadded
    (block_shape == array shape satisfies the (8,128) rule without padding).
    """
    target = _cdiv(B, max(num_cores, 1))
    tm = max(SUBLANE, min(MAX_TM, _round_up(target, SUBLANE)))
    if tm >= B:
        return B, B                    # one full-array block, no batch padding
    return tm, _round_up(B, tm)


def _fused_mlp_kernel(*refs, n_layers):
    """Fused MLP: refs = (x, w_0..w_{L-1}, b_0..b_{L-1}, out).

    x:   [tm, F]
    w_i: [in_i, out_i]   (full, resident in VMEM, single-buffered)
    b_i: [1, out_i]
    out: [tm, out_last]
    All intermediates stay in vregs/VMEM; ReLU on all layers but the last.
    """
    x_ref = refs[0]
    w_refs = refs[1:1 + n_layers]
    b_refs = refs[1 + n_layers:1 + 2 * n_layers]
    o_ref = refs[1 + 2 * n_layers]

    h = x_ref[...].astype(jnp.float32)
    for i in range(n_layers):
        h = jnp.dot(h, w_refs[i][...], preferred_element_type=jnp.float32)
        h = h + b_refs[i][...]            # bias added once (no K grid)
        if i != n_layers - 1:
            h = jnp.maximum(h, 0.0)       # f32 epilogue, cast only at the end
    o_ref[...] = h.astype(o_ref.dtype)


def fused_mlp(x2d, params):
    """One pallas_call running the whole layer stack with resident weights."""
    B, F = x2d.shape
    n_layers = len(params)
    ws = [w for (w, _) in params]
    bs = [b.reshape(1, -1) for (_, b) in params]
    out_f = ws[-1].shape[1]
    assert ws[0].shape[0] == F

    num_cores = _num_tensorcores()
    tm, B_pad = _choose_batch_tile(B, num_cores)
    grid = (B_pad // tm,)

    if B_pad != B:
        # Zero rows are exact: padded rows are sliced off after the call.
        x2d = jnp.zeros((B_pad, F), x2d.dtype).at[:B, :].set(x2d)

    # --- VMEM budget (resident-weight design) -------------------------------
    itemsize = 4  # f32
    weight_bytes = (sum(w.size for w in ws) + sum(b.size for b in bs)) * itemsize
    io_bytes = 2 * (tm * F + tm * out_f) * itemsize          # double-buffered x/out
    max_feat = max([F] + [w.shape[1] for w in ws])
    scratch_bytes = 4 * tm * max_feat * itemsize             # activation headroom
    need = weight_bytes + io_bytes + scratch_bytes

    vmem_cap = _vmem_capacity_bytes()
    if need > (vmem_cap * 3) // 4:
        # TODO(synk): fall back to a K/N-tiled grid with a VMEM f32 accumulator
        # when the resident weight stack exceeds the per-generation VMEM budget
        # (64 MiB on v7x, 128 MiB on v5e/v6e).
        raise ValueError(
            f"Resident-weight fused MLP needs ~{need} bytes of VMEM, exceeding "
            f"the budget on this TPU ({vmem_cap} bytes).")
    vmem_limit = int(min(need + (16 << 20), 64 << 20))

    # --- BlockSpecs ----------------------------------------------------------
    def const_spec(shape):
        # Constant index_map -> the block never changes; single-buffer it.
        return pl.BlockSpec(shape, lambda i: (0, 0),
                            memory_space=pltpu.VMEM,
                            pipeline_mode=pl.Buffered(1))

    in_specs = [pl.BlockSpec((tm, F), lambda i: (i, 0),
                             memory_space=pltpu.VMEM)]
    in_specs += [const_spec(w.shape) for w in ws]
    in_specs += [const_spec(b.shape) for b in bs]
    out_spec = pl.BlockSpec((tm, out_f), lambda i: (i, 0),
                            memory_space=pltpu.VMEM)

    # --- Cost hint for the XLA scheduler -------------------------------------
    flops = 2 * B_pad * sum(w.shape[0] * w.shape[1] for w in ws)
    bytes_accessed = (B_pad * F + B_pad * out_f) * itemsize + weight_bytes
    cost = pl.CostEstimate(flops=flops, transcendentals=0,
                           bytes_accessed=bytes_accessed)

    kernel = functools.partial(_fused_mlp_kernel, n_layers=n_layers)
    y = pl.pallas_call(
        kernel,
        out_shape=jax.ShapeDtypeStruct((B_pad, out_f), x2d.dtype),
        grid=grid,
        in_specs=in_specs,
        out_specs=out_spec,
        compiler_params=pltpu.CompilerParams(
            dimension_semantics=("parallel",),
            vmem_limit_bytes=vmem_limit),
        cost_estimate=cost,
    )(x2d, *ws, *bs)

    return y[:B] if B_pad != B else y


def init_style_dense_params(key, dims):
    """torch.nn.Linear default init: U(-sqrt(k), sqrt(k)), k = 1/in_size."""
    params = []
    for i in range(len(dims) - 1):
        in_size, out_size = dims[i], dims[i + 1]
        key, kw, kb = jax.random.split(key, 3)
        bound = 1.0 / jnp.sqrt(jnp.float32(in_size))
        w = jax.random.uniform(
            kw, (in_size, out_size), jnp.float32, minval=-bound, maxval=bound)
        b = jax.random.uniform(
            kb, (out_size,), jnp.float32, minval=-bound, maxval=bound)
        params.append((w, b))
    return params


def style_dense_forward(x, params):
    """style_Dense forward: flatten, fused MLP (one pallas_call)."""
    B = x.shape[0]
    h = x.reshape(B, -1)                  # torch.nn.Flatten
    return fused_mlp(h, params)


if __name__ == "__main__":
    key = jax.random.PRNGKey(0)
    k_x, k_p = jax.random.split(key)

    # Input: NCHW, small shapes.  Flattened feature size = 4*4*4 = 64.
    B, C, H, W = 2, 4, 4, 4
    x = jax.random.normal(k_x, (B, C, H, W), dtype=jnp.float32)

    # dims = [in_features, hidden, hidden, out]  (activation_type = ReLU)
    dims = [C * H * W, 32, 32, 8]
    params = init_style_dense_params(k_p, dims)

    out = style_dense_forward(x, params)
    out = jax.block_until_ready(out)

    # Sanity check against a pure-JAX reference of the same math.
    h_ref = x.reshape(B, -1)
    for i, (w, b) in enumerate(params):
        h_ref = h_ref @ w + b
        if i != len(params) - 1:
            h_ref = jnp.maximum(h_ref, 0.0)
    assert out.shape == (B, dims[-1])
    assert jnp.allclose(out, h_ref, atol=1e-5, rtol=1e-5)

    print("KERNEL_OK")
</pallas_src>

<mosaic_0001>
module attributes {stable_mosaic.version = 11 : i64} {
  func.func @_fused_mlp_kernel(%arg0: i32, %arg1: memref<2x64xf32, #tpu.memory_space<vmem>>, %arg2: memref<64x32xf32, #tpu.memory_space<vmem>>, %arg3: memref<32x32xf32, #tpu.memory_space<vmem>>, %arg4: memref<32x8xf32, #tpu.memory_space<vmem>>, %arg5: memref<1x32xf32, #tpu.memory_space<vmem>>, %arg6: memref<1x32xf32, #tpu.memory_space<vmem>>, %arg7: memref<1x8xf32, #tpu.memory_space<vmem>>, %arg8: memref<2x8xf32, #tpu.memory_space<vmem>>) attributes {dimension_semantics = [#tpu.dimension_semantics<parallel>], iteration_bounds = array<i64: 1>, scalar_prefetch = 0 : i64, scratch_operands = 0 : i64, tpu.core_type = #tpu.core_type<tc>, window_params = [{transform_indices = @transform_0, window_bounds = array<i64: 2, 64>}, {pipeline_mode = #tpu.pipeline_mode<synchronous>, transform_indices = @transform_1, window_bounds = array<i64: 64, 32>}, {pipeline_mode = #tpu.pipeline_mode<synchronous>, transform_indices = @transform_2, window_bounds = array<i64: 32, 32>}, {pipeline_mode = #tpu.pipeline_mode<synchronous>, transform_indices = @transform_3, window_bounds = array<i64: 32, 8>}, {pipeline_mode = #tpu.pipeline_mode<synchronous>, transform_indices = @transform_4, window_bounds = array<i64: 1, 32>}, {pipeline_mode = #tpu.pipeline_mode<synchronous>, transform_indices = @transform_5, window_bounds = array<i64: 1, 32>}, {pipeline_mode = #tpu.pipeline_mode<synchronous>, transform_indices = @transform_6, window_bounds = array<i64: 1, 8>}, {transform_indices = @transform_7, window_bounds = array<i64: 2, 8>}]} {
    %c0 = arith.constant 0 : index
    %c0_0 = arith.constant 0 : index
    %0 = vector.load %arg1[%c0, %c0_0] : memref<2x64xf32, #tpu.memory_space<vmem>>, vector<2x64xf32>
    %c0_1 = arith.constant 0 : index
    %c0_2 = arith.constant 0 : index
    %1 = vector.load %arg2[%c0_1, %c0_2] : memref<64x32xf32, #tpu.memory_space<vmem>>, vector<64x32xf32>
    %cst = arith.constant dense<0.000000e+00> : vector<2x32xf32>
    %2 = tpu.matmul %0, %1, %cst {dimension_numbers = #tpu.dot_dimension_numbers<[1], [0], [0], [1], [0, 0, 1, 1], [], []>} : vector<2x64xf32>, vector<64x32xf32>, vector<2x32xf32> -> vector<2x32xf32>
    %c0_3 = arith.constant 0 : index
    %c0_4 = arith.constant 0 : index
    %3 = vector.load %arg5[%c0_3, %c0_4] : memref<1x32xf32, #tpu.memory_space<vmem>>, vector<1x32xf32>
    %4 = vector.broadcast %3 : vector<1x32xf32> to vector<2x32xf32>
    %5 = arith.addf %2, %4 : vector<2x32xf32>
    %cst_5 = arith.constant 0.000000e+00 : f32
    %6 = vector.broadcast %cst_5 : f32 to vector<2x32xf32>
    %7 = arith.maximumf %5, %6 : vector<2x32xf32>
    %c0_6 = arith.constant 0 : index
    %c0_7 = arith.constant 0 : index
    %8 = vector.load %arg3[%c0_6, %c0_7] : memref<32x32xf32, #tpu.memory_space<vmem>>, vector<32x32xf32>
    %cst_8 = arith.constant dense<0.000000e+00> : vector<2x32xf32>
    %9 = tpu.matmul %7, %8, %cst_8 {dimension_numbers = #tpu.dot_dimension_numbers<[1], [0], [0], [1], [0, 0, 1, 1], [], []>} : vector<2x32xf32>, vector<32x32xf32>, vector<2x32xf32> -> vector<2x32xf32>
    %c0_9 = arith.constant 0 : index
    %c0_10 = arith.constant 0 : index
    %10 = vector.load %arg6[%c0_9, %c0_10] : memref<1x32xf32, #tpu.memory_space<vmem>>, vector<1x32xf32>
    %11 = vector.broadcast %10 : vector<1x32xf32> to vector<2x32xf32>
    %12 = arith.addf %9, %11 : vector<2x32xf32>
    %cst_11 = arith.constant 0.000000e+00 : f32
    %13 = vector.broadcast %cst_11 : f32 to vector<2x32xf32>
    %14 = arith.maximumf %12, %13 : vector<2x32xf32>
    %c0_12 = arith.constant 0 : index
    %c0_13 = arith.constant 0 : index
    %15 = vector.load %arg4[%c0_12, %c0_13] : memref<32x8xf32, #tpu.memory_space<vmem>>, vector<32x8xf32>
    %cst_14 = arith.constant dense<0.000000e+00> : vector<2x8xf32>
    %16 = tpu.matmul %14, %15, %cst_14 {dimension_numbers = #tpu.dot_dimension_numbers<[1], [0], [0], [1], [0, 0, 1, 1], [], []>} : vector<2x32xf32>, vector<32x8xf32>, vector<2x8xf32> -> vector<2x8xf32>
    %c0_15 = arith.constant 0 : index
    %c0_16 = arith.constant 0 : index
    %17 = vector.load %arg7[%c0_15, %c0_16] : memref<1x8xf32, #tpu.memory_space<vmem>>, vector<1x8xf32>
    %18 = vector.broadcast %17 : vector<1x8xf32> to vector<2x8xf32>
    %19 = arith.addf %16, %18 : vector<2x8xf32>
    %c0_17 = arith.constant 0 : index
    %c0_18 = arith.constant 0 : index
    %20 = vector.load %arg8[%c0_17, %c0_18] : memref<2x8xf32, #tpu.memory_space<vmem>>, vector<2x8xf32>
    tpu.vector_store %arg8[%c0_17, %c0_18], %19 {strides = array<i32>} : memref<2x8xf32, #tpu.memory_space<vmem>>, vector<2x8xf32>,
    return
  }
  func.func @transform_0(%arg0: i32) -> (i32, i32) {
    %c0_i32 = arith.constant 0 : i32
    %c0_i32_0 = arith.constant 0 : i32
    return %arg0, %c0_i32 : i32, i32
  }
  func.func @transform_1(%arg0: i32) -> (i32, i32) {
    %c0_i32 = arith.constant 0 : i32
    %c0_i32_0 = arith.constant 0 : i32
    %c0_i32_1 = arith.constant 0 : i32
    return %c0_i32, %c0_i32_0 : i32, i32
  }
  func.func @transform_2(%arg0: i32) -> (i32, i32) {
    %c0_i32 = arith.constant 0 : i32
    %c0_i32_0 = arith.constant 0 : i32
    %c0_i32_1 = arith.constant 0 : i32
    return %c0_i32, %c0_i32_0 : i32, i32
  }
  func.func @transform_3(%arg0: i32) -> (i32, i32) {
    %c0_i32 = arith.constant 0 : i32
    %c0_i32_0 = arith.constant 0 : i32
    %c0_i32_1 = arith.constant 0 : i32
    return %c0_i32, %c0_i32_0 : i32, i32
  }
  func.func @transform_4(%arg0: i32) -> (i32, i32) {
    %c0_i32 = arith.constant 0 : i32
    %c0_i32_0 = arith.constant 0 : i32
    %c0_i32_1 = arith.constant 0 : i32
    return %c0_i32, %c0_i32_0 : i32, i32
  }
  func.func @transform_5(%arg0: i32) -> (i32, i32) {
    %c0_i32 = arith.constant 0 : i32
    %c0_i32_0 = arith.constant 0 : i32
    %c0_i32_1 = arith.constant 0 : i32
    return %c0_i32, %c0_i32_0 : i32, i32
  }
  func.func @transform_6(%arg0: i32) -> (i32, i32) {
    %c0_i32 = arith.constant 0 : i32
    %c0_i32_0 = arith.constant 0 : i32
    %c0_i32_1 = arith.constant 0 : i32
    return %c0_i32, %c0_i32_0 : i32, i32
  }
  func.func @transform_7(%arg0: i32) -> (i32, i32) {
    %c0_i32 = arith.constant 0 : i32
    %c0_i32_0 = arith.constant 0 : i32
    return %arg0, %c0_i32 : i32, i32
  }
}

</mosaic_0001>

<llo_original>
// kernel: tpu_custom_call.1
$region0: #{tpu_custom_call.1}
  #allocation0 [shape = 'u32[]', space=smem, size = 0x4, offset = 0x4, fixed_abs, tag = 'smem constant byte address 0x4 - core index']
  #allocation1 [shape = 'u32[144,128]{1,0:T(1,128)}', space=vmem, size = 0x12000, scoped, tag = 'internal scratch']
  %s0 = inlined_call_operand.vmem [shape: f32[2,64], index: 0, kind: input, shape index: {}]
  %s1 = inlined_call_operand.vmem [shape: f32[64,32], index: 1, kind: input, shape index: {}]
  %s2 = inlined_call_operand.vmem [shape: f32[32,32], index: 2, kind: input, shape index: {}]
  %s3 = inlined_call_operand.vmem [shape: f32[32,8], index: 3, kind: input, shape index: {}]
  %s4 = inlined_call_operand.vmem [shape: f32[1,32], index: 4, kind: input, shape index: {}]
  %s5 = inlined_call_operand.vmem [shape: f32[1,32], index: 5, kind: input, shape index: {}]
  %s6 = inlined_call_operand.vmem [shape: f32[1,8], index: 6, kind: input, shape index: {}]
  %s7 = inlined_call_operand.hbm [shape: f32[2,8], index: 7, kind: output, shape index: {}]
  %s8 = sld [smem:[#allocation0]]
  $region38: #{tpu_custom_call.1} parent=0
    _
  %s10 = ssub.s32 1, %s8
  %s11 = scalar_select 0, %s10, %s8
  $region1: #{tpu_custom_call.1} parent=0
    #allocation2 [shape = 'u8[1024]{0}', space=vmem, size = 0x400, scoped, tag = 'output window, operand 0, single buffered']
    #allocation3 [shape = 's32[1]{0}', space=sflag, size = 0x4, scoped, tag = 'scoped memory for tpu_custom_call.1']
    %12 = vsyncpa [#allocation3], 0
    // Predicated region
    $region2: #{tpu_custom_call.1} parent=1 // pred_check
      _
    $region3: #{tpu_custom_call.1} parent=1 // pred_check_branch
      %14 = sbr.rel (0) target = $region5
    $region4: #{tpu_custom_call.1} parent=1 // pred_region
      _
    $region5: #{tpu_custom_call.1} parent=1 // pred_fallthru
      _
    // Predicated region
    $region6: #{tpu_custom_call.1} parent=1 // pred_check
      _
    $region7: #{tpu_custom_call.1} parent=1 // pred_check_branch
      %16 = sbr.rel (0) target = $region9
    $region8: #{tpu_custom_call.1} parent=1 // pred_region
      _
    $region9: #{tpu_custom_call.1} parent=1 // pred_fallthru
      _
    // Predicated region
    $region10: #{tpu_custom_call.1} parent=1 // pred_check
      _
    $region11: #{tpu_custom_call.1} parent=1 // pred_check_branch
      %18 = sbr.rel (0) target = $region13
    $region12: #{tpu_custom_call.1} parent=1 // pred_region
      _
    $region13: #{tpu_custom_call.1} parent=1 // pred_fallthru
      _
    // Predicated region
    $region14: #{tpu_custom_call.1} parent=1 // pred_check
      _
    $region15: #{tpu_custom_call.1} parent=1 // pred_check_branch
      %20 = sbr.rel (0) target = $region17
    $region16: #{tpu_custom_call.1} parent=1 // pred_region
      _
    $region17: #{tpu_custom_call.1} parent=1 // pred_fallthru
      _
    // Predicated region
    $region18: #{tpu_custom_call.1} parent=1 // pred_check
      _
    $region19: #{tpu_custom_call.1} parent=1 // pred_check_branch
      %22 = sbr.rel (0) target = $region21
    $region20: #{tpu_custom_call.1} parent=1 // pred_region
      _
    $region21: #{tpu_custom_call.1} parent=1 // pred_fallthru
      _
    // Predicated region
    $region22: #{tpu_custom_call.1} parent=1 // pred_check
      _
    $region23: #{tpu_custom_call.1} parent=1 // pred_check_branch
      %24 = sbr.rel (0) target = $region25
    $region24: #{tpu_custom_call.1} parent=1 // pred_region
      _
    $region25: #{tpu_custom_call.1} parent=1 // pred_fallthru
      _
    // Predicated region
    $region26: #{tpu_custom_call.1} parent=1 // pred_check
      _
    $region27: #{tpu_custom_call.1} parent=1 // pred_check_branch
      %26 = sbr.rel (0) target = $region29
    $region28: #{tpu_custom_call.1} parent=1 // pred_region
      _
    $region29: #{tpu_custom_call.1} parent=1 // pred_fallthru
      _
    %v27 = vld [vmem:[%s0] sm:$0x3]
    %v28 = vld [vmem:[%s1] sm:$0xff]
    %v29 = vld [vmem:[%s1 + $0x8] sm:$0xff]
    %v30 = vld [vmem:[%s1 + $0x10] sm:$0xff]
    %v31 = vld [vmem:[%s1 + $0x18] sm:$0xff]
    %v32 = vld [vmem:[%s1 + $0x20] sm:$0xff]
    %v33 = vld [vmem:[%s1 + $0x28] sm:$0xff]
    %v34 = vld [vmem:[%s1 + $0x30] sm:$0xff]
    %v35 = vld [vmem:[%s1 + $0x38] sm:$0xff]
    %v36 = vld [vmem:[%s4] sm:$0x1]
    %v38 = vlaneseq
    %v39 = vshrl.u32 %v38, 7
    %v40 = vsub.s32 0, %v39
    %v41 = vrot.slane %v36, %v40
    %vm43 = vcmask 523264
    %v45 = vsel %vm43, %v27, 0
    %47 = vmatprep.subr.mxu0 0.0
    %48 = vmatpush1.msra.mxu0 0.0
    %49 = vmatprep.subr.mxu0 0.0
    %50 = vmatpush1.msra.mxu0 0.0
    %51 = vmatprep.subr.mxu0 0.0
    %52 = vmatpush1.msra.mxu0 0.0
    %53 = vmatprep.subr.mxu0 0.0
    %54 = vmatpush1.msra.mxu0 0.0
    %55 = vmatprep.subr.mxu0 0.0
    %56 = vmatpush1.msra.mxu0 0.0
    %57 = vmatprep.subr.mxu0 0.0
    %58 = vmatpush1.msra.mxu0 0.0
    %59 = vmatprep.subr.mxu0 0.0
    %60 = vmatpush1.msra.mxu0 0.0
    %61 = vmatprep.subr.mxu0 0.0
    %62 = vmatpush1.msra.mxu0 0.0
    %63 = vmatprep.subr.mxu0 0.0
    %64 = vmatpush1.msra.mxu0 %v35
    %65 = vmatprep.subr.mxu0 0.0
    %66 = vmatpush1.msra.mxu0 %v34
    %67 = vmatprep.subr.mxu0 0.0
    %68 = vmatpush1.msra.mxu0 %v33
    %69 = vmatprep.subr.mxu0 0.0
    %70 = vmatpush1.msra.mxu0 %v32
    %71 = vmatprep.subr.mxu0 0.0
    %72 = vmatpush1.msra.mxu0 %v31
    %73 = vmatprep.subr.mxu0 0.0
    %74 = vmatpush1.msra.mxu0 %v30
    %75 = vmatprep.subr.mxu0 0.0
    %76 = vmatpush1.msra.mxu0 %v29
    %77 = vmatprep.subr.mxu0 0.0
    %78 = vmatpush1.msra.mxu0 %v28
    %79 = vmatprep.subr.mxu0 0.0
    %80 = vmatpush2.msra.mxu0 0.0
    %81 = vmatprep.subr.mxu0 0.0
    %82 = vmatpush2.msra.mxu0 0.0
    %83 = vmatprep.subr.mxu0 0.0
    %84 = vmatpush2.msra.mxu0 0.0
    %85 = vmatprep.subr.mxu0 0.0
    %86 = vmatpush2.msra.mxu0 0.0
    %87 = vmatprep.subr.mxu0 0.0
    %88 = vmatpush2.msra.mxu0 0.0
    %89 = vmatprep.subr.mxu0 0.0
    %90 = vmatpush2.msra.mxu0 0.0
    %91 = vmatprep.subr.mxu0 0.0
    %92 = vmatpush2.msra.mxu0 0.0
    %93 = vmatprep.subr.mxu0 0.0
    %94 = vmatpush2.msra.mxu0 0.0
    %95 = vmatprep.subr.mxu0 0.0
    %96 = vmatpush2.msra.mxu0 0.0
    %97 = vmatprep.subr.mxu0 0.0
    %98 = vmatpush2.msra.mxu0 0.0
    %99 = vmatprep.subr.mxu0 0.0
    %100 = vmatpush2.msra.mxu0 0.0
    %101 = vmatprep.subr.mxu0 0.0
    %102 = vmatpush2.msra.mxu0 0.0
    %103 = vmatprep.subr.mxu0 0.0
    %104 = vmatpush2.msra.mxu0 0.0
    %105 = vmatprep.subr.mxu0 0.0
    %106 = vmatpush2.msra.mxu0 0.0
    %107 = vmatprep.subr.mxu0 0.0
    %108 = vmatpush2.msra.mxu0 0.0
    %109 = vmatprep.subr.mxu0 0.0
    %110 = vmatpush2.msra.mxu0 0.0
    %111 = vmatprep.mubr.f32.mxu0 0.0
    %112 = vmatmul.mubr.f32.gmra.mxu0 %v45
    %v113 = vpop.f32.mrf.mxu0
    %v114 = vadd.f32 %v41, %v113
    %v115 = vpop.f32.mrf.mxu0
    %116 = vdwg.mxu0
    %v117 = vmax.f32 %v114, 0.0
    %v118 = vld [vmem:[%s2] sm:$0xff]
    %v119 = vld [vmem:[%s2 + $0x8] sm:$0xff]
    %v120 = vld [vmem:[%s2 + $0x10] sm:$0xff]
    %v121 = vld [vmem:[%s2 + $0x18] sm:$0xff]
    %v122 = vld [vmem:[%s5] sm:$0x1]
    %v124 = vlaneseq
    %v125 = vshrl.u32 %v124, 7
    %v126 = vsub.s32 0, %v125
    %v127 = vrot.slane %v122, %v126
    %vm129 = vcmask 261120
    %v131 = vsel %vm129, %v117, 0
    %133 = vmatprep.subr.mxu0 0.0
    %134 = vmatpush1.msra.mxu0 0.0
    %135 = vmatprep.subr.mxu0 0.0
    %136 = vmatpush1.msra.mxu0 0.0
    %137 = vmatprep.subr.mxu0 0.0
    %138 = vmatpush1.msra.mxu0 0.0
    %139 = vmatprep.subr.mxu0 0.0
    %140 = vmatpush1.msra.mxu0 0.0
    %141 = vmatprep.subr.mxu0 0.0
    %142 = vmatpush1.msra.mxu0 0.0
    %143 = vmatprep.subr.mxu0 0.0
    %144 = vmatpush1.msra.mxu0 0.0
    %145 = vmatprep.subr.mxu0 0.0
    %146 = vmatpush1.msra.mxu0 0.0
    %147 = vmatprep.subr.mxu0 0.0
    %148 = vmatpush1.msra.mxu0 0.0
    %149 = vmatprep.subr.mxu0 0.0
    %150 = vmatpush1.msra.mxu0 0.0
    %151 = vmatprep.subr.mxu0 0.0
    %152 = vmatpush1.msra.mxu0 0.0
    %153 = vmatprep.subr.mxu0 0.0
    %154 = vmatpush1.msra.mxu0 0.0
    %155 = vmatprep.subr.mxu0 0.0
    %156 = vmatpush1.msra.mxu0 0.0
    %157 = vmatprep.subr.mxu0 0.0
    %158 = vmatpush1.msra.mxu0 %v121
    %159 = vmatprep.subr.mxu0 0.0
    %160 = vmatpush1.msra.mxu0 %v120
    %161 = vmatprep.subr.mxu0 0.0
    %162 = vmatpush1.msra.mxu0 %v119
    %163 = vmatprep.subr.mxu0 0.0
    %164 = vmatpush1.msra.mxu0 %v118
    %165 = vmatprep.subr.mxu0 0.0
    %166 = vmatpush2.msra.mxu0 0.0
    %167 = vmatprep.subr.mxu0 0.0
    %168 = vmatpush2.msra.mxu0 0.0
    %169 = vmatprep.subr.mxu0 0.0
    %170 = vmatpush2.msra.mxu0 0.0
    %171 = vmatprep.subr.mxu0 0.0
    %172 = vmatpush2.msra.mxu0 0.0
    %173 = vmatprep.subr.mxu0 0.0
    %174 = vmatpush2.msra.mxu0 0.0
    %175 = vmatprep.subr.mxu0 0.0
    %176 = vmatpush2.msra.mxu0 0.0
    %177 = vmatprep.subr.mxu0 0.0
    %178 = vmatpush2.msra.mxu0 0.0
    %179 = vmatprep.subr.mxu0 0.0
    %180 = vmatpush2.msra.mxu0 0.0
    %181 = vmatprep.subr.mxu0 0.0
    %182 = vmatpush2.msra.mxu0 0.0
    %183 = vmatprep.subr.mxu0 0.0
    %184 = vmatpush2.msra.mxu0 0.0
    %185 = vmatprep.subr.mxu0 0.0
    %186 = vmatpush2.msra.mxu0 0.0
    %187 = vmatprep.subr.mxu0 0.0
    %188 = vmatpush2.msra.mxu0 0.0
    %189 = vmatprep.subr.mxu0 0.0
    %190 = vmatpush2.msra.mxu0 0.0
    %191 = vmatprep.subr.mxu0 0.0
    %192 = vmatpush2.msra.mxu0 0.0
    %193 = vmatprep.subr.mxu0 0.0
    %194 = vmatpush2.msra.mxu0 0.0
    %195 = vmatprep.subr.mxu0 0.0
    %196 = vmatpush2.msra.mxu0 0.0
    %197 = vmatprep.mubr.f32.mxu0 0.0
    %198 = vmatmul.mubr.f32.gmra.mxu0 %v131
    %v199 = vpop.f32.mrf.mxu0
    %v200 = vadd.f32 %v127, %v199
    %v201 = vpop.f32.mrf.mxu0
    %202 = vdwg.mxu0
    %v203 = vmax.f32 %v200, 0.0
    %v204 = vld [vmem:[%s3] sm:$0xff]
    %v205 = vld [vmem:[%s3 + $0x8] sm:$0xff]
    %v206 = vld [vmem:[%s3 + $0x10] sm:$0xff]
    %v207 = vld [vmem:[%s3 + $0x18] sm:$0xff]
    %v208 = vld [vmem:[%s6] sm:$0x1]
    %v210 = vlaneseq
    %v211 = vshrl.u32 %v210, 7
    %v212 = vsub.s32 0, %v211
    %v213 = vrot.slane %v208, %v212
    %v216 = vsel %vm129, %v203, 0
    %218 = vmatprep.subr.mxu0 0.0
    %219 = vmatpush1.msra.mxu0 0.0
    %220 = vmatprep.subr.mxu0 0.0
    %221 = vmatpush1.msra.mxu0 0.0
    %222 = vmatprep.subr.mxu0 0.0
    %223 = vmatpush1.msra.mxu0 0.0
    %224 = vmatprep.subr.mxu0 0.0
    %225 = vmatpush1.msra.mxu0 0.0
    %226 = vmatprep.subr.mxu0 0.0
    %227 = vmatpush1.msra.mxu0 0.0
    %228 = vmatprep.subr.mxu0 0.0
    %229 = vmatpush1.msra.mxu0 0.0
    %230 = vmatprep.subr.mxu0 0.0
    %231 = vmatpush1.msra.mxu0 0.0
    %232 = vmatprep.subr.mxu0 0.0
    %233 = vmatpush1.msra.mxu0 0.0
    %234 = vmatprep.subr.mxu0 0.0
    %235 = vmatpush1.msra.mxu0 0.0
    %236 = vmatprep.subr.mxu0 0.0
    %237 = vmatpush1.msra.mxu0 0.0
    %238 = vmatprep.subr.mxu0 0.0
    %239 = vmatpush1.msra.mxu0 0.0
    %240 = vmatprep.subr.mxu0 0.0
    %241 = vmatpush1.msra.mxu0 0.0
    %242 = vmatprep.subr.mxu0 0.0
    %243 = vmatpush1.msra.mxu0 %v207
    %244 = vmatprep.subr.mxu0 0.0
    %245 = vmatpush1.msra.mxu0 %v206
    %246 = vmatprep.subr.mxu0 0.0
    %247 = vmatpush1.msra.mxu0 %v205
    %248 = vmatprep.subr.mxu0 0.0
    %249 = vmatpush1.msra.mxu0 %v204
    %250 = vmatprep.subr.mxu0 0.0
    %251 = vmatpush2.msra.mxu0 0.0
    %252 = vmatprep.subr.mxu0 0.0
    %253 = vmatpush2.msra.mxu0 0.0
    %254 = vmatprep.subr.mxu0 0.0
    %255 = vmatpush2.msra.mxu0 0.0
    %256 = vmatprep.subr.mxu0 0.0
    %257 = vmatpush2.msra.mxu0 0.0
    %258 = vmatprep.subr.mxu0 0.0
    %259 = vmatpush2.msra.mxu0 0.0
    %260 = vmatprep.subr.mxu0 0.0
    %261 = vmatpush2.msra.mxu0 0.0
    %262 = vmatprep.subr.mxu0 0.0
    %263 = vmatpush2.msra.mxu0 0.0
    %264 = vmatprep.subr.mxu0 0.0
    %265 = vmatpush2.msra.mxu0 0.0
    %266 = vmatprep.subr.mxu0 0.0
    %267 = vmatpush2.msra.mxu0 0.0
    %268 = vmatprep.subr.mxu0 0.0
    %269 = vmatpush2.msra.mxu0 0.0
    %270 = vmatprep.subr.mxu0 0.0
    %271 = vmatpush2.msra.mxu0 0.0
    %272 = vmatprep.subr.mxu0 0.0
    %273 = vmatpush2.msra.mxu0 0.0
    %274 = vmatprep.subr.mxu0 0.0
    %275 = vmatpush2.msra.mxu0 0.0
    %276 = vmatprep.subr.mxu0 0.0
    %277 = vmatpush2.msra.mxu0 0.0
    %278 = vmatprep.subr.mxu0 0.0
    %279 = vmatpush2.msra.mxu0 0.0
    %280 = vmatprep.subr.mxu0 0.0
    %281 = vmatpush2.msra.mxu0 0.0
    %282 = vmatprep.mubr.f32.mxu0 0.0
    %283 = vmatmul.mubr.f32.gmra.mxu0 %v216
    %v284 = vpop.f32.mrf.mxu0
    %v285 = vadd.f32 %v213, %v284
    %v286 = vpop.f32.mrf.mxu0
    %287 = vdwg.mxu0
    %vm288 = vcmask 58368
    %289 = vst.msk [vmem:[#allocation2] sm:$0x3] %vm288, %v285
    // Predicated region
    $region30: #{tpu_custom_call.1} parent=1 // pred_check
      _
    $region31: #{tpu_custom_call.1} parent=1 // pred_check_branch
      %291 = sbr.rel (0) target = $region33
    $region32: #{tpu_custom_call.1} parent=1 // pred_region
      %s293 = ssub.s32 32, 32
      %294 = vsyncadd [#allocation3], %s293
      %s296 = sshll.u32 [#allocation2], 4
      %s297 = int_to_ptr.vmem [resolvable:$true] %s296
      %299 = dma.vmem_to_hbm [thread:$0]  %s297, 32, %s7, [#allocation3]
    $region33: #{tpu_custom_call.1} parent=1 // pred_fallthru
      _
    // Predicated region
    $region34: #{tpu_custom_call.1} parent=1 // pred_check
      _
    $region35: #{tpu_custom_call.1} parent=1 // pred_check_branch
      %301 = sbr.rel (0) target = $region37
    $region36: #{tpu_custom_call.1} parent=1 // pred_region
      %302 = dma.done [#allocation3], 32
    $region37: #{tpu_custom_call.1} parent=1 // pred_fallthru
      _
    %303 = vsyncpa [#allocation3], 1

</llo_original>
